<compile_context>
chip_gen: v7x
topology: tpu7x:2x2x1
jax: 0.10.0
libtpu: 0.0.40
codegen_flags: <defaults>
</compile_context>

<pallas_src>
import functools

import jax
import jax.numpy as jnp
from jax.experimental import pallas as pl
from jax.experimental.pallas import tpu as pltpu


def _round_up(x, m):
    return (x + m - 1) // m * m


def _pad_cast_2d(a, rows, cols, dtype):
    """Pad [r, c] -> [rows, cols] with zeros and cast; no-op if already exact."""
    r, c = a.shape
    if r == rows and c == cols and a.dtype == dtype:
        return a
    out = jnp.zeros((rows, cols), dtype)
    return out.at[:r, :c].set(a.astype(dtype))


def _fused_head_kernel(x_ref, roi_ref, wp_ref, bp_ref, wc_ref, bc_ref,
                       out_ref, acc_ref):
    """acc += roi_tile @ Wp_tile ; at last K step: y = acc+bp+x, out = y@Wc+bc."""
    k = pl.program_id(1)

    @pl.when(k == 0)
    def _():
        acc_ref[...] = jnp.zeros_like(acc_ref)

    # K-tiled projection matmul, f32 accumulation on the MXU.
    acc_ref[...] += jnp.dot(roi_ref[...], wp_ref[...],
                            preferred_element_type=jnp.float32)

    @pl.when(k == pl.num_programs(1) - 1)
    def _():
        # Bias + residual only once, in the finalize step (x is f32).
        y = acc_ref[...] + bp_ref[...] + x_ref[...]
        logits = jnp.dot(y.astype(wc_ref.dtype), wc_ref[...],
                         preferred_element_type=jnp.float32)
        out_ref[...] = logits + bc_ref[...]


def fused_head(x_2d, roi_2d, w_proj, b_proj, w_cls, b_cls, *, tm=512, tk=1024):
    """x_2d: [T, D], roi_2d: [T, R], w_proj: [R, D], w_cls: [D, C] -> [T, C]."""
    T, D = x_2d.shape
    R = roi_2d.shape[1]
    C = w_cls.shape[1]

    # Lane-align feature dims; pick tiles respecting the (8, 128) rule.
    D_pad = _round_up(D, 128)
    C_pad = _round_up(C, 128)
    TM = min(tm, _round_up(T, 8))
    T_pad = _round_up(T, TM)
    TK = min(tk, _round_up(R, 128))
    R_pad = _round_up(R, TK)

    f32 = jnp.float32
    bf16 = jnp.bfloat16

    # Pad + cast only when needed (zero-padding contributes nothing to the
    # contractions). Big streams go bf16; residual x and biases stay f32.
    x_p = _pad_cast_2d(x_2d, T_pad, D_pad, f32)
    roi_p = _pad_cast_2d(roi_2d, T_pad, R_pad, bf16)
    wp_p = _pad_cast_2d(w_proj, R_pad, D_pad, bf16)
    wc_p = _pad_cast_2d(w_cls, D_pad, C_pad, bf16)
    bp_p = _pad_cast_2d(b_proj.reshape(1, -1), 1, D_pad, f32)
    bc_p = _pad_cast_2d(b_cls.reshape(1, -1), 1, C_pad, f32)

    grid = (T_pad // TM, R_pad // TK)

    # Rough VMEM budget (double-buffered inputs + f32 acc + f32 out); only
    # raise the scoped limit if the default ~32 MiB would not cover it.
    est = (2 * 2 * (TM * TK + TK * D_pad + D_pad * C_pad)   # bf16 streams
           + 2 * 4 * TM * D_pad                             # x residual (f32)
           + 2 * 4 * TM * C_pad                             # output (f32)
           + 4 * TM * D_pad                                 # accumulator
           + 2 * 4 * (D_pad + C_pad))                       # biases
    vmem_limit = None
    if est * 2 > 32 * 1024 * 1024:
        vmem_limit = int(min(est * 2, 64 * 1024 * 1024))

    out = pl.pallas_call(
        _fused_head_kernel,
        out_shape=jax.ShapeDtypeStruct((T_pad, C_pad), jnp.float32),
        grid=grid,
        in_specs=[
            pl.BlockSpec((TM, D_pad), lambda i, k: (i, 0)),     # x residual (f32)
            pl.BlockSpec((TM, TK), lambda i, k: (i, k)),        # roi features
            pl.BlockSpec((TK, D_pad), lambda i, k: (k, 0)),     # W_proj [in,out]
            pl.BlockSpec((1, D_pad), lambda i, k: (0, 0)),      # b_proj
            pl.BlockSpec((D_pad, C_pad), lambda i, k: (0, 0)),  # W_cls [in,out]
            pl.BlockSpec((1, C_pad), lambda i, k: (0, 0)),      # b_cls
        ],
        out_specs=pl.BlockSpec((TM, C_pad), lambda i, k: (i, 0)),
        scratch_shapes=[pltpu.VMEM((TM, D_pad), jnp.float32)],
        compiler_params=pltpu.CompilerParams(
            dimension_semantics=("parallel", "arbitrary"),
            vmem_limit_bytes=vmem_limit),
    )(x_p, roi_p, wp_p, bp_p, wc_p, bc_p)

    return out[:T, :C]


def cross_entropy_loss(logits, labels, attention_mask=None):
    """Plain-JAX glue mimicking LayoutLMImageEmbeddingOutput.compute_loss.

    Uses one-hot * log_softmax instead of a gather (lowers cleanly on TPU).
    """
    num_classes = logits.shape[-1]
    flat_logits = logits.reshape(-1, num_classes)
    flat_labels = labels.reshape(-1)
    log_probs = jax.nn.log_softmax(flat_logits, axis=-1)
    one_hot = jax.nn.one_hot(flat_labels, num_classes, dtype=log_probs.dtype)
    nll = -jnp.sum(one_hot * log_probs, axis=-1)
    if attention_mask is not None:
        active = (attention_mask.reshape(-1) == 1).astype(jnp.float32)
        return jnp.sum(nll * active) / jnp.maximum(jnp.sum(active), 1.0)
    return jnp.mean(nll)


@functools.partial(jax.jit, static_argnames=("tm", "tk"))
def layoutlm_image_embedding_forward(last_hidden_state, roi_feat,
                                     w_proj, b_proj, w_cls, b_cls,
                                     *, tm=512, tk=1024):
    """Forward pass after the pretrained feature extractors.

    last_hidden_state: [B, S, D]   (output of layoutlm)
    roi_feat:          [B, S, R]   (roi_pooler output viewed as [B, S, C*7*7])
    returns logits:    [B, S, num_classes]
    """
    B, S, D = last_hidden_state.shape
    R = roi_feat.shape[-1]
    x_2d = last_hidden_state.reshape(B * S, D)
    roi_2d = roi_feat.reshape(B * S, R)
    logits = fused_head(x_2d, roi_2d, w_proj, b_proj, w_cls, b_cls,
                        tm=tm, tk=tk)
    return logits.reshape(B, S, -1)


if __name__ == "__main__":
    # Small shapes consistent with the module (scaled down):
    #   hidden D=32 (vs 768), roi feature R=4*7*7=196 (vs 1024*7*7),
    #   num_classes=4, batch=2, seq=8.
    B, S, D, C = 2, 8, 32, 4
    R = 4 * 7 * 7  # channels * 7 * 7 from the ROI pooler

    key = jax.random.PRNGKey(0)
    k1, k2, k3, k4, k5, k6, k7, k8 = jax.random.split(key, 8)

    # Stand-ins for the pretrained feature extractors' outputs.
    last_hidden_state = jax.random.normal(k1, (B, S, D), dtype=jnp.float32)
    roi_feat = jax.random.normal(k2, (B, S, R), dtype=jnp.float32)

    # Deterministic parameter init (Linear weights stored as [in, out]).
    w_proj = jax.random.normal(k3, (R, D), dtype=jnp.float32) * 0.02
    b_proj = jax.random.normal(k4, (1, D), dtype=jnp.float32) * 0.02
    w_cls = jax.random.normal(k5, (D, C), dtype=jnp.float32) * 0.02
    b_cls = jax.random.normal(k6, (1, C), dtype=jnp.float32) * 0.02

    labels = jax.random.randint(k7, (B, S), 0, C, dtype=jnp.int32)
    attention_mask = (jax.random.uniform(k8, (B, S)) > 0.2).astype(jnp.int32)

    # Small tiles so the toy shapes exercise a real (2, 2) grid with a tiled
    # K-reduction (TM=8, TK=128); real LayoutLM shapes use the 512/1024 defaults.
    logits = layoutlm_image_embedding_forward(
        last_hidden_state, roi_feat, w_proj, b_proj, w_cls, b_cls,
        tm=8, tk=128)
    logits = jax.block_until_ready(logits)

    # Reference check (plain JAX) mirroring the kernel's mixed precision:
    # bf16-rounded big streams, f32 residual/biases, bf16 input to classifier.
    rb = roi_feat.astype(jnp.bfloat16).astype(jnp.float32)
    wpb = w_proj.astype(jnp.bfloat16).astype(jnp.float32)
    wcb = w_cls.astype(jnp.bfloat16).astype(jnp.float32)
    y_ref = last_hidden_state + (rb @ wpb + b_proj)
    ref = y_ref.astype(jnp.bfloat16).astype(jnp.float32) @ wcb + b_cls
    assert logits.shape == (B, S, C)
    assert jnp.allclose(logits, ref, atol=1e-2, rtol=1e-2), "mismatch vs reference"

    # Optional loss path (compute_loss with attention_mask), plain-JAX glue.
    loss = jax.block_until_ready(
        cross_entropy_loss(logits, labels, attention_mask))
    assert jnp.isfinite(loss)

    print("KERNEL_OK")
</pallas_src>

<mosaic_0001>
module attributes {stable_mosaic.version = 11 : i64} {
  func.func @_fused_head_kernel(%arg0: i32, %arg1: i32, %arg2: memref<8x128xf32, #tpu.memory_space<vmem>>, %arg3: memref<8x128xbf16, #tpu.memory_space<vmem>>, %arg4: memref<128x128xbf16, #tpu.memory_space<vmem>>, %arg5: memref<1x128xf32, #tpu.memory_space<vmem>>, %arg6: memref<128x128xbf16, #tpu.memory_space<vmem>>, %arg7: memref<1x128xf32, #tpu.memory_space<vmem>>, %arg8: memref<8x128xf32, #tpu.memory_space<vmem>>, %arg9: memref<8x128xf32, #tpu.memory_space<vmem>>) attributes {dimension_semantics = [#tpu.dimension_semantics<parallel>, #tpu.dimension_semantics<arbitrary>], iteration_bounds = array<i64: 2, 2>, scalar_prefetch = 0 : i64, scratch_operands = 1 : i64, tpu.core_type = #tpu.core_type<tc>, window_params = [{transform_indices = @transform_0, window_bounds = array<i64: 8, 128>}, {transform_indices = @transform_1, window_bounds = array<i64: 8, 128>}, {transform_indices = @transform_2, window_bounds = array<i64: 128, 128>}, {pipeline_mode = #tpu.pipeline_mode<synchronous>, transform_indices = @transform_3, window_bounds = array<i64: 1, 128>}, {pipeline_mode = #tpu.pipeline_mode<synchronous>, transform_indices = @transform_4, window_bounds = array<i64: 128, 128>}, {pipeline_mode = #tpu.pipeline_mode<synchronous>, transform_indices = @transform_5, window_bounds = array<i64: 1, 128>}, {transform_indices = @transform_6, window_bounds = array<i64: 8, 128>}]} {
    %c0_i32 = arith.constant 0 : i32
    %0 = arith.cmpi eq, %arg1, %c0_i32 : i32
    %1 = arith.extui %0 : i1 to i32
    %c0_i32_0 = arith.constant 0 : i32
    %2 = arith.cmpi ne, %1, %c0_i32_0 : i32
    scf.if %2 {
      %cst_9 = arith.constant 0.000000e+00 : f32
      %12 = vector.broadcast %cst_9 : f32 to vector<8x128xf32>
      %c0_10 = arith.constant 0 : index
      %c0_11 = arith.constant 0 : index
      %13 = vector.load %arg9[%c0_10, %c0_11] : memref<8x128xf32, #tpu.memory_space<vmem>>, vector<8x128xf32>
      tpu.vector_store %arg9[%c0_10, %c0_11], %12 {strides = array<i32>} : memref<8x128xf32, #tpu.memory_space<vmem>>, vector<8x128xf32>,
    } else {
    }
    %c0 = arith.constant 0 : index
    %c0_1 = arith.constant 0 : index
    %3 = vector.load %arg9[%c0, %c0_1] : memref<8x128xf32, #tpu.memory_space<vmem>>, vector<8x128xf32>
    %c0_2 = arith.constant 0 : index
    %c0_3 = arith.constant 0 : index
    %4 = vector.load %arg3[%c0_2, %c0_3] : memref<8x128xbf16, #tpu.memory_space<vmem>>, vector<8x128xbf16>
    %c0_4 = arith.constant 0 : index
    %c0_5 = arith.constant 0 : index
    %5 = vector.load %arg4[%c0_4, %c0_5] : memref<128x128xbf16, #tpu.memory_space<vmem>>, vector<128x128xbf16>
    %cst = arith.constant dense<0.000000e+00> : vector<8x128xf32>
    %6 = tpu.matmul %4, %5, %cst {dimension_numbers = #tpu.dot_dimension_numbers<[1], [0], [0], [1], [0, 0, 1, 1], [], []>} : vector<8x128xbf16>, vector<128x128xbf16>, vector<8x128xf32> -> vector<8x128xf32>
    %7 = arith.addf %3, %6 : vector<8x128xf32>
    %c0_6 = arith.constant 0 : index
    %c0_7 = arith.constant 0 : index
    %8 = vector.load %arg9[%c0_6, %c0_7] : memref<8x128xf32, #tpu.memory_space<vmem>>, vector<8x128xf32>
    tpu.vector_store %arg9[%c0_6, %c0_7], %7 {strides = array<i32>} : memref<8x128xf32, #tpu.memory_space<vmem>>, vector<8x128xf32>,
    %c1_i32 = arith.constant 1 : i32
    %9 = arith.cmpi eq, %arg1, %c1_i32 : i32
    %10 = arith.extui %9 : i1 to i32
    %c0_i32_8 = arith.constant 0 : i32
    %11 = arith.cmpi ne, %10, %c0_i32_8 : i32
    scf.if %11 {
      %c0_9 = arith.constant 0 : index
      %c0_10 = arith.constant 0 : index
      %12 = vector.load %arg9[%c0_9, %c0_10] : memref<8x128xf32, #tpu.memory_space<vmem>>, vector<8x128xf32>
      %c0_11 = arith.constant 0 : index
      %c0_12 = arith.constant 0 : index
      %13 = vector.load %arg5[%c0_11, %c0_12] : memref<1x128xf32, #tpu.memory_space<vmem>>, vector<1x128xf32>
      %14 = vector.broadcast %13 : vector<1x128xf32> to vector<8x128xf32>
      %15 = arith.addf %12, %14 : vector<8x128xf32>
      %c0_13 = arith.constant 0 : index
      %c0_14 = arith.constant 0 : index
      %16 = vector.load %arg2[%c0_13, %c0_14] : memref<8x128xf32, #tpu.memory_space<vmem>>, vector<8x128xf32>
      %17 = arith.addf %15, %16 : vector<8x128xf32>
      %18 = arith.truncf %17 : vector<8x128xf32> to vector<8x128xbf16>
      %c0_15 = arith.constant 0 : index
      %c0_16 = arith.constant 0 : index
      %19 = vector.load %arg6[%c0_15, %c0_16] : memref<128x128xbf16, #tpu.memory_space<vmem>>, vector<128x128xbf16>
      %cst_17 = arith.constant dense<0.000000e+00> : vector<8x128xf32>
      %20 = tpu.matmul %18, %19, %cst_17 {dimension_numbers = #tpu.dot_dimension_numbers<[1], [0], [0], [1], [0, 0, 1, 1], [], []>} : vector<8x128xbf16>, vector<128x128xbf16>, vector<8x128xf32> -> vector<8x128xf32>
      %c0_18 = arith.constant 0 : index
      %c0_19 = arith.constant 0 : index
      %21 = vector.load %arg7[%c0_18, %c0_19] : memref<1x128xf32, #tpu.memory_space<vmem>>, vector<1x128xf32>
      %22 = vector.broadcast %21 : vector<1x128xf32> to vector<8x128xf32>
      %23 = arith.addf %20, %22 : vector<8x128xf32>
      %c0_20 = arith.constant 0 : index
      %c0_21 = arith.constant 0 : index
      %24 = vector.load %arg8[%c0_20, %c0_21] : memref<8x128xf32, #tpu.memory_space<vmem>>, vector<8x128xf32>
      tpu.vector_store %arg8[%c0_20, %c0_21], %23 {strides = array<i32>} : memref<8x128xf32, #tpu.memory_space<vmem>>, vector<8x128xf32>,
    } else {
    }
    return
  }
  func.func @transform_0(%arg0: i32, %arg1: i32) -> (i32, i32) {
    %c0_i32 = arith.constant 0 : i32
    %c0_i32_0 = arith.constant 0 : i32
    return %arg0, %c0_i32 : i32, i32
  }
  func.func @transform_1(%arg0: i32, %arg1: i32) -> (i32, i32) {
    %c0_i32 = arith.constant 0 : i32
    return %arg0, %arg1 : i32, i32
  }
  func.func @transform_2(%arg0: i32, %arg1: i32) -> (i32, i32) {
    %c0_i32 = arith.constant 0 : i32
    %c0_i32_0 = arith.constant 0 : i32
    return %arg1, %c0_i32 : i32, i32
  }
  func.func @transform_3(%arg0: i32, %arg1: i32) -> (i32, i32) {
    %c0_i32 = arith.constant 0 : i32
    %c0_i32_0 = arith.constant 0 : i32
    %c0_i32_1 = arith.constant 0 : i32
    return %c0_i32, %c0_i32_0 : i32, i32
  }
  func.func @transform_4(%arg0: i32, %arg1: i32) -> (i32, i32) {
    %c0_i32 = arith.constant 0 : i32
    %c0_i32_0 = arith.constant 0 : i32
    %c0_i32_1 = arith.constant 0 : i32
    return %c0_i32, %c0_i32_0 : i32, i32
  }
  func.func @transform_5(%arg0: i32, %arg1: i32) -> (i32, i32) {
    %c0_i32 = arith.constant 0 : i32
    %c0_i32_0 = arith.constant 0 : i32
    %c0_i32_1 = arith.constant 0 : i32
    return %c0_i32, %c0_i32_0 : i32, i32
  }
  func.func @transform_6(%arg0: i32, %arg1: i32) -> (i32, i32) {
    %c0_i32 = arith.constant 0 : i32
    %c0_i32_0 = arith.constant 0 : i32
    return %arg0, %c0_i32 : i32, i32
  }
}

</mosaic_0001>

<llo_original>
// kernel: layoutlm_image_embedding_forward.1
$region0: #{layoutlm_image_embedding_forward.1}
  #allocation0 [shape = 'u32[]', space=smem, size = 0x4, offset = 0x4, fixed_abs, tag = 'smem constant byte address 0x4 - core index']
  #allocation1 [shape = 'u32[144,128]{1,0:T(1,128)}', space=vmem, size = 0x12000, scoped, tag = 'internal scratch']
  #allocation2 [shape = 'f32[8,128]{1,0:T(8,128)}', space=vmem, size = 0x1000, scoped, tag = 'scratch operand']
  %s0 = inlined_call_operand.vmem [shape: f32[16,128], index: 0, kind: input, shape index: {}]
  %s1 = inlined_call_operand.vmem [shape: bf16[16,256], index: 1, kind: input, shape index: {}]
  %s2 = inlined_call_operand.vmem [shape: bf16[256,128], index: 2, kind: input, shape index: {}]
  %s3 = inlined_call_operand.vmem [shape: f32[1,128], index: 3, kind: input, shape index: {}]
  %s4 = inlined_call_operand.vmem [shape: bf16[128,128], index: 4, kind: input, shape index: {}]
  %s5 = inlined_call_operand.vmem [shape: f32[1,128], index: 5, kind: input, shape index: {}]
  %s6 = inlined_call_operand.vmem [shape: f32[16,128], index: 6, kind: output, shape index: {}]
  %s7 = sld [smem:[#allocation0]]
  $region65: #{layoutlm_image_embedding_forward.1} parent=0
    _
  %s9 = ssub.s32 1, %s7
  %s10 = scalar_select 0, %s9, %s7
  loop: start=0, step=1, limit=6
  $region2: #{layoutlm_image_embedding_forward.1} parent=0 // loop_pre_header
    _
  $region3: #{layoutlm_image_embedding_forward.1} parent=0 // loop_header
    %s12 = sphi 0, %s16
    %p13 = scmp.ge.s32.totalorder %s12, 6
    %s19 = sphi 0, %s31
    %s20 = sphi 0, %s27
    %s21 = sphi 0, %s19
    %s22 = sphi 0, %s20
    %s23 = sphi 0, %s21
    %s24 = sphi 0, %s22
    %s34 = sphi 0, %s36
    %s37 = sphi 0, %s34
    %s38 = sphi 0, %s37
    %s54 = sphi 0, %s38
    %s62 = sphi 0, %s64
    %s65 = sphi 0, %s62
    %s66 = sphi 0, %s65
    %s82 = sphi 0, %s66
    %s88 = sphi 0, %s90
    %s91 = sphi 0, %s88
    %s92 = sphi 0, %s91
    %s108 = sphi 0, %s92
    %s112 = sphi 0, %s112
    %s114 = sphi 0, %s112
    %s115 = sphi 0, %s114
    %s129 = sphi 0, %s115
    %s133 = sphi 0, %s133
    %s135 = sphi 0, %s133
    %s136 = sphi 0, %s135
    %s150 = sphi 0, %s136
    %s154 = sphi 0, %s154
    %s156 = sphi 0, %s154
    %s157 = sphi 0, %s156
    %s171 = sphi 0, %s157
    %s177 = sphi 0, %s179
    %s180 = sphi 0, %s177
    %s181 = sphi 0, %s180
    %s197 = sphi 0, %s181
  $region4: #{layoutlm_image_embedding_forward.1} parent=0 // loop_header_branch
    %15 = sbr.rel (%p13) target = $region8
  $region5: #{layoutlm_image_embedding_forward.1} parent=0 // loop_body
    %s17 = ssub.s32 %s12, 1
    %s18 = ssub.s32 %s12, 2
    %s25 = sadd.s32 1, %s20
    %p26 = scmp.ge.s32.totalorder %s25, 2
    %s27 = scalar_select %p26, 0, %s25
    %s28 = sadd.s32 1, %s19
    %s29 = scalar_select %p26, %s28, %s19
    %p30 = scmp.ge.s32.totalorder %s29, 2
    %s31 = scalar_select %p30, 0, %s29
    %s32 = ssub.s32 %s19, %s31
    %p33 = scmp.eq.s32.totalorder %s32, 0
    %s35 = sadd.s32 %s34, 1
    %s36 = scalar_select %p33, %s34, %s35
    %p39 = pneg %p33
    %p40 = scmp.eq.s32.totalorder %s12, 3
    %p41 = por %p39, %p40
    %p42 = scmp.ne.s32.totalorder %s34, %s37
    %p43 = scmp.eq.s32.totalorder %s12, 0
    %p44 = por %p42, %p43
    %p45 = scmp.ne.s32.totalorder %s34, %s37
    %p46 = scmp.eq.s32.totalorder %s17, 3
    %p47 = por %p45, %p46
    %p48 = scmp.ne.s32.totalorder %s37, %s38
    %p49 = scmp.eq.s32.totalorder %s17, 0
    %p50 = por %p48, %p49
    %p51 = scmp.ne.s32.totalorder %s37, %s38
    %p52 = scmp.eq.s32.totalorder %s18, 3
    %p53 = por %p51, %p52
    %p55 = scmp.ne.s32.totalorder %s38, %s54
    %p56 = scmp.eq.s32.totalorder %s18, 0
    %p57 = por %p55, %p56
    %s58 = ssub.s32 %s19, %s31
    %s59 = ssub.s32 %s20, %s27
    %s60 = sor.u32 %s58, %s59
    %p61 = scmp.eq.s32.totalorder %s60, 0
    %s63 = sadd.s32 %s62, 1
    %s64 = scalar_select %p61, %s62, %s63
    %p67 = pneg %p61
    %p68 = scmp.eq.s32.totalorder %s12, 3
    %p69 = por %p67, %p68
    %p70 = scmp.ne.s32.totalorder %s62, %s65
    %p71 = scmp.eq.s32.totalorder %s12, 0
    %p72 = por %p70, %p71
    %p73 = scmp.ne.s32.totalorder %s62, %s65
    %p74 = scmp.eq.s32.totalorder %s17, 3
    %p75 = por %p73, %p74
    %p76 = scmp.ne.s32.totalorder %s65, %s66
    %p77 = scmp.eq.s32.totalorder %s17, 0
    %p78 = por %p76, %p77
    %p79 = scmp.ne.s32.totalorder %s65, %s66
    %p80 = scmp.eq.s32.totalorder %s18, 3
    %p81 = por %p79, %p80
    %p83 = scmp.ne.s32.totalorder %s66, %s82
    %p84 = scmp.eq.s32.totalorder %s18, 0
    %p85 = por %p83, %p84
    %s86 = ssub.s32 %s20, %s27
    %p87 = scmp.eq.s32.totalorder %s86, 0
    %s89 = sadd.s32 %s88, 1
    %s90 = scalar_select %p87, %s88, %s89
    %p93 = pneg %p87
    %p94 = scmp.eq.s32.totalorder %s12, 3
    %p95 = por %p93, %p94
    %p96 = scmp.ne.s32.totalorder %s88, %s91
    %p97 = scmp.eq.s32.totalorder %s12, 0
    %p98 = por %p96, %p97
    %p99 = scmp.ne.s32.totalorder %s88, %s91
    %p100 = scmp.eq.s32.totalorder %s17, 3
    %p101 = por %p99, %p100
    %p102 = scmp.ne.s32.totalorder %s91, %s92
    %p103 = scmp.eq.s32.totalorder %s17, 0
    %p104 = por %p102, %p103
    %p105 = scmp.ne.s32.totalorder %s91, %s92
    %p106 = scmp.eq.s32.totalorder %s18, 3
    %p107 = por %p105, %p106
    %p109 = scmp.ne.s32.totalorder %s92, %s108
    %p110 = scmp.eq.s32.totalorder %s18, 0
    %p111 = por %p109, %p110
    %s113 = sadd.s32 %s112, 1
    %p116 = scmp.eq.s32.totalorder %s12, 3
    %p117 = scmp.ne.s32.totalorder %s112, %s114
    %p118 = scmp.eq.s32.totalorder %s12, 0
    %p119 = por %p117, %p118
    %p120 = scmp.ne.s32.totalorder %s112, %s114
    %p121 = scmp.eq.s32.totalorder %s17, 3
    %p122 = por %p120, %p121
    %p123 = scmp.ne.s32.totalorder %s114, %s115
    %p124 = scmp.eq.s32.totalorder %s17, 0
    %p125 = por %p123, %p124
    %p126 = scmp.ne.s32.totalorder %s114, %s115
    %p127 = scmp.eq.s32.totalorder %s18, 3
    %p128 = por %p126, %p127
    %p130 = scmp.ne.s32.totalorder %s115, %s129
    %p131 = scmp.eq.s32.totalorder %s18, 0
    %p132 = por %p130, %p131
    %s134 = sadd.s32 %s133, 1
    %p137 = scmp.eq.s32.totalorder %s12, 3
    %p138 = scmp.ne.s32.totalorder %s133, %s135
    %p139 = scmp.eq.s32.totalorder %s12, 0
    %p140 = por %p138, %p139
    %p141 = scmp.ne.s32.totalorder %s133, %s135
    %p142 = scmp.eq.s32.totalorder %s17, 3
    %p143 = por %p141, %p142
    %p144 = scmp.ne.s32.totalorder %s135, %s136
    %p145 = scmp.eq.s32.totalorder %s17, 0
    %p146 = por %p144, %p145
    %p147 = scmp.ne.s32.totalorder %s135, %s136
    %p148 = scmp.eq.s32.totalorder %s18, 3
    %p149 = por %p147, %p148
    %p151 = scmp.ne.s32.totalorder %s136, %s150
    %p152 = scmp.eq.s32.totalorder %s18, 0
    %p153 = por %p151, %p152
    %s155 = sadd.s32 %s154, 1
    %p158 = scmp.eq.s32.totalorder %s12, 3
    %p159 = scmp.ne.s32.totalorder %s154, %s156
    %p160 = scmp.eq.s32.totalorder %s12, 0
    %p161 = por %p159, %p160
    %p162 = scmp.ne.s32.totalorder %s154, %s156
    %p163 = scmp.eq.s32.totalorder %s17, 3
    %p164 = por %p162, %p163
    %p165 = scmp.ne.s32.totalorder %s156, %s157
    %p166 = scmp.eq.s32.totalorder %s17, 0
    %p167 = por %p165, %p166
    %p168 = scmp.ne.s32.totalorder %s156, %s157
    %p169 = scmp.eq.s32.totalorder %s18, 3
    %p170 = por %p168, %p169
    %p172 = scmp.ne.s32.totalorder %s157, %s171
    %p173 = scmp.eq.s32.totalorder %s18, 0
    %p174 = por %p172, %p173
    %s175 = ssub.s32 %s19, %s31
    %p176 = scmp.eq.s32.totalorder %s175, 0
    %s178 = sadd.s32 %s177, 1
    %s179 = scalar_select %p176, %s177, %s178
    %p182 = pneg %p176
    %p183 = scmp.eq.s32.totalorder %s12, 3
    %p184 = por %p182, %p183
    %p185 = scmp.ne.s32.totalorder %s177, %s180
    %p186 = scmp.eq.s32.totalorder %s12, 0
    %p187 = por %p185, %p186
    %p188 = scmp.ne.s32.totalorder %s177, %s180
    %p189 = scmp.eq.s32.totalorder %s17, 3
    %p190 = por %p188, %p189
    %p191 = scmp.ne.s32.totalorder %s180, %s181
    %p192 = scmp.eq.s32.totalorder %s17, 0
    %p193 = por %p191, %p192
    %p194 = scmp.ne.s32.totalorder %s180, %s181
    %p195 = scmp.eq.s32.totalorder %s18, 3
    %p196 = por %p194, %p195
    %p198 = scmp.ne.s32.totalorder %s181, %s197
    %p199 = scmp.eq.s32.totalorder %s18, 0
    %p200 = por %p198, %p199
    %p201 = scmp.le.s32.totalorder 1, %s12
    %p202 = scmp.lt.s32.totalorder %s12, 5
    %p203 = pnand %p201, %p202
    %p204 = pneg %p203
    // Predicated region
    $region9: #{layoutlm_image_embedding_forward.1} parent=5 // pred_check
      _
    $region10: #{layoutlm_image_embedding_forward.1} parent=5 // pred_check_branch
      %206 = sbr.rel (%p203) target = $region12
    $region11: #{layoutlm_image_embedding_forward.1} parent=5 // pred_region
      %s207 = ssub.s32 %s12, 1
      // Predicated region
      $region13: #{layoutlm_image_embedding_forward.1} parent=11 // pred_check
        %p208 = pneg %p125
      $region14: #{layoutlm_image_embedding_forward.1} parent=11 // pred_check_branch
        %210 = sbr.rel (%p208) target = $region16
      $region15: #{layoutlm_image_embedding_forward.1} parent=11 // pred_region
        _
      $region16: #{layoutlm_image_embedding_forward.1} parent=11 // pred_fallthru
        _
      // Predicated region
      $region17: #{layoutlm_image_embedding_forward.1} parent=11 // pred_check
        %p211 = pneg %p146
      $region18: #{layoutlm_image_embedding_forward.1} parent=11 // pred_check_branch
        %213 = sbr.rel (%p211) target = $region20
      $region19: #{layoutlm_image_embedding_forward.1} parent=11 // pred_region
        _
      $region20: #{layoutlm_image_embedding_forward.1} parent=11 // pred_fallthru
        _
      // Predicated region
      $region21: #{layoutlm_image_embedding_forward.1} parent=11 // pred_check
        %p214 = pneg %p167
      $region22: #{layoutlm_image_embedding_forward.1} parent=11 // pred_check_branch
        %216 = sbr.rel (%p214) target = $region24
      $region23: #{layoutlm_image_embedding_forward.1} parent=11 // pred_region
        _
      $region24: #{layoutlm_image_embedding_forward.1} parent=11 // pred_fallthru
        _
    $region12: #{layoutlm_image_embedding_forward.1} parent=5 // pred_fallthru
      _
    %p217 = scmp.lt.s32.totalorder %s12, 4
    // Predicated region
    $region25: #{layoutlm_image_embedding_forward.1} parent=5 // pred_check
      %p218 = pneg %p217
    $region26: #{layoutlm_image_embedding_forward.1} parent=5 // pred_check_branch
      %220 = sbr.rel (%p218) target = $region28
    $region27: #{layoutlm_image_embedding_forward.1} parent=5 // pred_region
      // Predicated region
      $region29: #{layoutlm_image_embedding_forward.1} parent=27 // pred_check
        %p221 = pneg %p44
      $region30: #{layoutlm_image_embedding_forward.1} parent=27 // pred_check_branch
        %223 = sbr.rel (%p221) target = $region32
      $region31: #{layoutlm_image_embedding_forward.1} parent=27 // pred_region
        %p224 = scmp.lt.s32.totalorder %s19, 1
        %s225 = scalar_select %p224, %s19, 1
        %s226 = smul.addr %s225, 8
        %s227 = scalar_lea.vmem %s0, %s226
      $region32: #{layoutlm_image_embedding_forward.1} parent=27 // pred_fallthru
        _
      // Predicated region
      $region33: #{layoutlm_image_embedding_forward.1} parent=27 // pred_check
        %p228 = pneg %p72
      $region34: #{layoutlm_image_embedding_forward.1} parent=27 // pred_check_branch
        %230 = sbr.rel (%p228) target = $region36
      $region35: #{layoutlm_image_embedding_forward.1} parent=27 // pred_region
        %p231 = scmp.lt.s32.totalorder %s19, 1
        %s232 = scalar_select %p231, %s19, 1
        %p233 = scmp.lt.s32.totalorder %s20, 1
        %s234 = scalar_select %p233, %s20, 1
        %s235 = smul.addr %s232, 2
        %s236 = sadd.s32 %s234, %s235
        %s237 = smul.addr %s236, 4
        %s238 = scalar_lea.vmem %s1, %s237
      $region36: #{layoutlm_image_embedding_forward.1} parent=27 // pred_fallthru
        _
      // Predicated region
      $region37: #{layoutlm_image_embedding_forward.1} parent=27 // pred_check
        %p239 = pneg %p98
      $region38: #{layoutlm_image_embedding_forward.1} parent=27 // pred_check_branch
        %241 = sbr.rel (%p239) target = $region40
      $region39: #{layoutlm_image_embedding_forward.1} parent=27 // pred_region
        %s242 = smul.u32 16, %s20
        %p243 = scmp.lt.s32.totalorder %s242, 31
        %s244 = scalar_select %p243, %s242, 31
        %s245 = smul.addr %s244, 4
        %s246 = scalar_lea.vmem %s2, %s245
        %s247 = smul.u32 16, %s20
      $region40: #{layoutlm_image_embedding_forward.1} parent=27 // pred_fallthru
        _
    $region28: #{layoutlm_image_embedding_forward.1} parent=5 // pred_fallthru
      _
    %p248 = scmp.le.s32.totalorder 1, %s12
    %p249 = scmp.lt.s32.totalorder %s12, 5
    %p250 = pnand %p248, %p249
    %p251 = pneg %p250
    // Predicated region
    $region41: #{layoutlm_image_embedding_forward.1} parent=5 // pred_check
      _
    $region42: #{layoutlm_image_embedding_forward.1} parent=5 // pred_check_branch
      %253 = sbr.rel (%p250) target = $region44
    $region43: #{layoutlm_image_embedding_forward.1} parent=5 // pred_region
      %s254 = ssub.s32 %s12, 1
      %p255 = scmp.lt.s32.totalorder %s21, 1
      %s256 = scalar_select %p255, %s21, 1
      %s257 = smul.addr %s256, 8
      %s258 = scalar_lea.vmem %s0, %s257
      %p259 = pneg %p50
      %p260 = pneg %p47
      %p261 = scmp.lt.s32.totalorder %s21, 1
      %s262 = scalar_select %p261, %s21, 1
      %p263 = scmp.lt.s32.totalorder %s22, 1
      %s264 = scalar_select %p263, %s22, 1
      %s265 = smul.addr %s262, 2
      %s266 = sadd.s32 %s264, %s265
      %s267 = smul.addr %s266, 4
      %s268 = scalar_lea.vmem %s1, %s267
      %p269 = pneg %p78
      %p270 = pneg %p75
      %s271 = smul.u32 16, %s22
      %p272 = scmp.lt.s32.totalorder %s271, 31
      %s273 = scalar_select %p272, %s271, 31
      %s274 = smul.addr %s273, 4
      %s275 = scalar_lea.vmem %s2, %s274
      %p276 = pneg %p104
      %p277 = pneg %p101
      %p278 = pneg %p125
      %p279 = pneg %p122
      %p280 = pneg %p146
      %p281 = pneg %p143
      %p282 = pneg %p167
      %p283 = pneg %p164
      %p284 = pneg %p193
      %p285 = pneg %p190
      %p286 = scmp.lt.s32.totalorder %s21, 1
      %s287 = scalar_select %p286, %s21, 1
      %s288 = smul.addr %s287, 8
      %s289 = scalar_lea.vmem %s6, %s288
      %p290 = scmp.lt.s32.totalorder %s21, 1
      %s291 = scalar_select %p290, %s21, 1
      %s292 = smul.addr %s291, 8
      %s293 = scalar_lea.vmem %s0, %s292
      %p294 = scmp.lt.s32.totalorder %s21, 1
      %s295 = scalar_select %p294, %s21, 1
      %p296 = scmp.lt.s32.totalorder %s22, 1
      %s297 = scalar_select %p296, %s22, 1
      %s298 = smul.addr %s295, 2
      %s299 = sadd.s32 %s297, %s298
      %s300 = smul.addr %s299, 4
      %s301 = scalar_lea.vmem %s1, %s300
      %s302 = smul.u32 16, %s22
      %p303 = scmp.lt.s32.totalorder %s302, 31
      %s304 = scalar_select %p303, %s302, 31
      %s305 = smul.addr %s304, 4
      %s306 = scalar_lea.vmem %s2, %s305
      %s307 = smul.u32 16, %s22
      %p308 = scmp.lt.s32.totalorder %s21, 1
      %s309 = scalar_select %p308, %s21, 1
      %s310 = smul.addr %s309, 8
      %s311 = scalar_lea.vmem %s6, %s310
      %p313 = scmp.eq.s32.totalorder %s22, 0
      // Predicated region
      $region45: #{layoutlm_image_embedding_forward.1} parent=43 // pred_check
        %p314 = pneg %p313
      $region46: #{layoutlm_image_embedding_forward.1} parent=43 // pred_check_branch
        %316 = sbr.rel (%p314) target = $region48
      $region47: #{layoutlm_image_embedding_forward.1} parent=43 // pred_region
        %317 = vst [vmem:[#allocation2] sm:$0xff] 0.0
      $region48: #{layoutlm_image_embedding_forward.1} parent=43 // pred_fallthru
        _
      %v318 = vld [vmem:[#allocation2] sm:$0xff]
      %v319 = vld [vmem:[%s301] sm:$0xf]
      %v320 = vld [vmem:[%s306] sm:$0xf]
      %v321 = vld [vmem:[%s306 + $0x4] sm:$0xf]
      %v322 = vld [vmem:[%s306 + $0x8] sm:$0xf]
      %v323 = vld [vmem:[%s306 + $0xc] sm:$0xf]
      %v324 = vld [vmem:[%s306 + $0x10] sm:$0xf]
      %v325 = vld [vmem:[%s306 + $0x14] sm:$0xf]
      %v326 = vld [vmem:[%s306 + $0x18] sm:$0xf]
      %v327 = vld [vmem:[%s306 + $0x1c] sm:$0xf]
      %v328 = vld [vmem:[%s306 + $0x20] sm:$0xf]
      %v329 = vld [vmem:[%s306 + $0x24] sm:$0xf]
      %v330 = vld [vmem:[%s306 + $0x28] sm:$0xf]
      %v331 = vld [vmem:[%s306 + $0x2c] sm:$0xf]
      %v332 = vld [vmem:[%s306 + $0x30] sm:$0xf]
      %v333 = vld [vmem:[%s306 + $0x34] sm:$0xf]
      %v334 = vld [vmem:[%s306 + $0x38] sm:$0xf]
      %v335 = vld [vmem:[%s306 + $0x3c] sm:$0xf]
      %v352 = vunpack.c.l.b16 %v320
      %v353 = vunpack.c.l.b16 %v321
      %v354 = vunpack.c.l.b16 %v322
      %v355 = vunpack.c.l.b16 %v323
      %v356 = vunpack.c.l.b16 %v324
      %v357 = vunpack.c.l.b16 %v325
      %v358 = vunpack.c.l.b16 %v326
      %v359 = vunpack.c.l.b16 %v327
      %v360 = vunpack.c.l.b16 %v328
      %v361 = vunpack.c.l.b16 %v329
      %v362 = vunpack.c.l.b16 %v330
      %v363 = vunpack.c.l.b16 %v331
      %v364 = vunpack.c.l.b16 %v332
      %v365 = vunpack.c.l.b16 %v333
      %v366 = vunpack.c.l.b16 %v334
      %v367 = vunpack.c.l.b16 %v335
      %v368 = vpack.c.b16 %v353, %v352
      %v369 = vpack.c.b16 %v355, %v354
      %v370 = vpack.c.b16 %v357, %v356
      %v371 = vpack.c.b16 %v359, %v358
      %v372 = vpack.c.b16 %v361, %v360
      %v373 = vpack.c.b16 %v363, %v362
      %v374 = vpack.c.b16 %v365, %v364
      %v375 = vpack.c.b16 %v367, %v366
      %384 = vmatprep.subr.bf16.mxu0 0
      %385 = vmatpush1.bf16.msra.mxu0 %v368
      %386 = vmatprep.subr.bf16.mxu0 0
      %387 = vmatpush1.bf16.msra.mxu0 %v369
      %388 = vmatprep.subr.bf16.mxu0 0
      %389 = vmatpush1.bf16.msra.mxu0 %v370
      %390 = vmatprep.subr.bf16.mxu0 0
      %391 = vmatpush1.bf16.msra.mxu0 %v371
      %392 = vmatprep.subr.bf16.mxu0 0
      %393 = vmatpush1.bf16.msra.mxu0 %v372
      %394 = vmatprep.subr.bf16.mxu0 0
      %395 = vmatpush1.bf16.msra.mxu0 %v373
      %396 = vmatprep.subr.bf16.mxu0 0
      %397 = vmatpush1.bf16.msra.mxu0 %v374
      %398 = vmatprep.subr.bf16.mxu0 0
      %399 = vmatpush1.bf16.msra.mxu0 %v375
      %400 = vmatprep.subr.bf16.mxu0 0
      %401 = vmatpush1.bf16.msra.mxu0 0
      %402 = vmatprep.subr.bf16.mxu0 0
      %403 = vmatpush1.bf16.msra.mxu0 0
      %404 = vmatprep.subr.bf16.mxu0 0
      %405 = vmatpush1.bf16.msra.mxu0 0
      %406 = vmatprep.subr.bf16.mxu0 0
      %407 = vmatpush1.bf16.msra.mxu0 0
      %408 = vmatprep.subr.bf16.mxu0 0
      %409 = vmatpush1.bf16.msra.mxu0 0
      %410 = vmatprep.subr.bf16.mxu0 0
      %411 = vmatpush1.bf16.msra.mxu0 0
      %412 = vmatprep.subr.bf16.mxu0 0
      %413 = vmatpush1.bf16.msra.mxu0 0
      %414 = vmatprep.subr.bf16.mxu0 0
      %415 = vmatpush1.bf16.msra.mxu0 0
      %416 = vmatprep.mubr.bf16.mxu0 0
      %417 = vmatmul.mubr.bf16.gmra.mrb[0].mxu0 %v319
      %v418 = vpop.f32.mrb[0].mxu0
      %v419 = vadd.f32 0.0, %v418
      %v420 = vpop.f32.mrb[0].mxu0
      %v421 = vpop.f32.mrb[0].mxu0
      %v422 = vpop.f32.mrb[0].mxu0
      %423 = vdwg.mxu0
      %v424 = vadd.f32 %v318, %v419
      %425 = vst [vmem:[#allocation2] sm:$0xff] %v424
      %p426 = scmp.eq.s32.totalorder %s22, 1
      // Predicated region
      $region49: #{layoutlm_image_embedding_forward.1} parent=43 // pred_check
        %p427 = pneg %p426
      $region50: #{layoutlm_image_embedding_forward.1} parent=43 // pred_check_branch
        %429 = sbr.rel (%p427) target = $region52
      $region51: #{layoutlm_image_embedding_forward.1} parent=43 // pred_region
        %v430 = vld [vmem:[#allocation2] sm:$0xff]
        %v431 = vld [vmem:[%s3] sm:$0x1]
        %v433 = vlaneseq
        %v434 = vshrl.u32 %v433, 7
        %v435 = vsub.s32 0, %v434
        %v436 = vrot.slane %v431, %v435
        %v438 = vadd.f32 %v430, %v436
        %v439 = vld [vmem:[%s293] sm:$0xff]
        %v440 = vadd.f32 %v438, %v439
        %v441 = vpack.c.bf16 %v440, %v440
        %v442 = vld [vmem:[%s4] sm:$0xf]
        %v443 = vld [vmem:[%s4 + $0x4] sm:$0xf]
        %v444 = vld [vmem:[%s4 + $0x8] sm:$0xf]
        %v445 = vld [vmem:[%s4 + $0xc] sm:$0xf]
        %v446 = vld [vmem:[%s4 + $0x10] sm:$0xf]
        %v447 = vld [vmem:[%s4 + $0x14] sm:$0xf]
        %v448 = vld [vmem:[%s4 + $0x18] sm:$0xf]
        %v449 = vld [vmem:[%s4 + $0x1c] sm:$0xf]
        %v450 = vld [vmem:[%s4 + $0x20] sm:$0xf]
        %v451 = vld [vmem:[%s4 + $0x24] sm:$0xf]
        %v452 = vld [vmem:[%s4 + $0x28] sm:$0xf]
        %v453 = vld [vmem:[%s4 + $0x2c] sm:$0xf]
        %v454 = vld [vmem:[%s4 + $0x30] sm:$0xf]
        %v455 = vld [vmem:[%s4 + $0x34] sm:$0xf]
        %v456 = vld [vmem:[%s4 + $0x38] sm:$0xf]
        %v457 = vld [vmem:[%s4 + $0x3c] sm:$0xf]
        %v458 = vld [vmem:[%s5] sm:$0x1]
        %v460 = vlaneseq
        %v461 = vshrl.u32 %v460, 7
        %v462 = vsub.s32 0, %v461
        %v463 = vrot.slane %v458, %v462
        %v481 = vunpack.c.l.b16 %v442
        %v482 = vunpack.c.l.b16 %v443
        %v483 = vunpack.c.l.b16 %v444
        %v484 = vunpack.c.l.b16 %v445
        %v485 = vunpack.c.l.b16 %v446
        %v486 = vunpack.c.l.b16 %v447
        %v487 = vunpack.c.l.b16 %v448
        %v488 = vunpack.c.l.b16 %v449
        %v489 = vunpack.c.l.b16 %v450
        %v490 = vunpack.c.l.b16 %v451
        %v491 = vunpack.c.l.b16 %v452
        %v492 = vunpack.c.l.b16 %v453
        %v493 = vunpack.c.l.b16 %v454
        %v494 = vunpack.c.l.b16 %v455
        %v495 = vunpack.c.l.b16 %v456
        %v496 = vunpack.c.l.b16 %v457
        %v497 = vpack.c.b16 %v482, %v481
        %v498 = vpack.c.b16 %v484, %v483
        %v499 = vpack.c.b16 %v486, %v485
        %v500 = vpack.c.b16 %v488, %v487
        %v501 = vpack.c.b16 %v490, %v489
        %v502 = vpack.c.b16 %v492, %v491
        %v503 = vpack.c.b16 %v494, %v493
        %v504 = vpack.c.b16 %v496, %v495
        %513 = vmatprep.subr.bf16.mxu0 0
        %514 = vmatpush1.bf16.msra.mxu0 %v497
        %515 = vmatprep.subr.bf16.mxu0 0
        %516 = vmatpush1.bf16.msra.mxu0 %v498
        %517 = vmatprep.subr.bf16.mxu0 0
        %518 = vmatpush1.bf16.msra.mxu0 %v499
        %519 = vmatprep.subr.bf16.mxu0 0
        %520 = vmatpush1.bf16.msra.mxu0 %v500
        %521 = vmatprep.subr.bf16.mxu0 0
        %522 = vmatpush1.bf16.msra.mxu0 %v501
        %523 = vmatprep.subr.bf16.mxu0 0
        %524 = vmatpush1.bf16.msra.mxu0 %v502
        %525 = vmatprep.subr.bf16.mxu0 0
        %526 = vmatpush1.bf16.msra.mxu0 %v503
        %527 = vmatprep.subr.bf16.mxu0 0
        %528 = vmatpush1.bf16.msra.mxu0 %v504
        %529 = vmatprep.subr.bf16.mxu0 0
        %530 = vmatpush1.bf16.msra.mxu0 0
        %531 = vmatprep.subr.bf16.mxu0 0
        %532 = vmatpush1.bf16.msra.mxu0 0
        %533 = vmatprep.subr.bf16.mxu0 0
        %534 = vmatpush1.bf16.msra.mxu0 0
        %535 = vmatprep.subr.bf16.mxu0 0
        %536 = vmatpush1.bf16.msra.mxu0 0
        %537 = vmatprep.subr.bf16.mxu0 0
        %538 = vmatpush1.bf16.msra.mxu0 0
        %539 = vmatprep.subr.bf16.mxu0 0
        %540 = vmatpush1.bf16.msra.mxu0 0
        %541 = vmatprep.subr.bf16.mxu0 0
        %542 = vmatpush1.bf16.msra.mxu0 0
        %543 = vmatprep.subr.bf16.mxu0 0
        %544 = vmatpush1.bf16.msra.mxu0 0
        %545 = vmatprep.mubr.bf16.mxu0 0
        %546 = vmatmul.mubr.bf16.gmra.mrb[0].mxu0 %v441
        %v547 = vpop.f32.mrb[0].mxu0
        %v548 = vadd.f32 %v463, %v547
        %v549 = vpop.f32.mrb[0].mxu0
        %v550 = vpop.f32.mrb[0].mxu0
        %v551 = vpop.f32.mrb[0].mxu0
        %552 = vdwg.mxu0
        %553 = vst [vmem:[%s311] sm:$0xff] %v548
      $region52: #{layoutlm_image_embedding_forward.1} parent=43 // pred_fallthru
        _
      %p554 = scmp.lt.s32.totalorder %s21, 1
      %s555 = scalar_select %p554, %s21, 1
      %s556 = smul.addr %s555, 8
      %s557 = scalar_lea.vmem %s6, %s556
      // Predicated region
      $region53: #{layoutlm_image_embedding_forward.1} parent=43 // pred_check
        %p558 = pneg %p190
      $region54: #{layoutlm_image_embedding_forward.1} parent=43 // pred_check_branch
        %560 = sbr.rel (%p558) target = $region56
      $region55: #{layoutlm_image_embedding_forward.1} parent=43 // pred_region
        _
      $region56: #{layoutlm_image_embedding_forward.1} parent=43 // pred_fallthru
        _
    $region44: #{layoutlm_image_embedding_forward.1} parent=5 // pred_fallthru
      _
    %p561 = scmp.le.s32.totalorder 2, %s12
    // Predicated region
    $region57: #{layoutlm_image_embedding_forward.1} parent=5 // pred_check
      %p562 = pneg %p561
    $region58: #{layoutlm_image_embedding_forward.1} parent=5 // pred_check_branch
      %564 = sbr.rel (%p562) target = $region60
    $region59: #{layoutlm_image_embedding_forward.1} parent=5 // pred_region
      %s565 = ssub.s32 %s12, 2
      // Predicated region
      $region61: #{layoutlm_image_embedding_forward.1} parent=59 // pred_check
        %p566 = pneg %p196
      $region62: #{layoutlm_image_embedding_forward.1} parent=59 // pred_check_branch
        %568 = sbr.rel (%p566) target = $region64
      $region63: #{layoutlm_image_embedding_forward.1} parent=59 // pred_region
        %p569 = scmp.lt.s32.totalorder %s23, 1
        %s570 = scalar_select %p569, %s23, 1
        %s571 = smul.addr %s570, 8
        %s572 = scalar_lea.vmem %s6, %s571
      $region64: #{layoutlm_image_embedding_forward.1} parent=59 // pred_fallthru
        _
    $region60: #{layoutlm_image_embedding_forward.1} parent=5 // pred_fallthru
      _
  $region6: #{layoutlm_image_embedding_forward.1} parent=0 // loop_footer
    %s16 = sadd.s32 1, %s12
  $region7: #{layoutlm_image_embedding_forward.1} parent=0 // loop_footer_branch
    %11 = sbr.rel target = $region3
  $region8: #{layoutlm_image_embedding_forward.1} parent=0 // loop_exit
    _

</llo_original>
